<compile_context>
chip_gen: v6e
topology: v6e:2x2x1
jax: 0.10.0
libtpu: 0.0.40
codegen_flags: <defaults>
</compile_context>

<pallas_src>
import jax
import jax.numpy as jnp
from jax.experimental import pallas as pl
from jax.experimental.pallas import tpu as pltpu

LANES = 128          # lane width (last dim)
SUBLANES = 8         # sublane multiple
TR_MAX = 2048        # max rows per grid step (1 MiB f32 per input tile)
SMALL_BYPASS = 1024  # complex elems below which plain XLA is faster


def _cmse_kernel(xr_ref, xi_ref, yr_ref, yi_ref, acc_ref):
    """Accumulate per-lane partial sums of |input - target|^2.

    xr/xi/yr/yi_ref: (tile_rows, 128) f32 tiles of the real/imag planes.
    acc_ref:         (1, 8, 128) f32 output block, resident across the inner
                     ("arbitrary") grid axis -> per-core accumulator.
    """
    @pl.when(pl.program_id(1) == 0)
    def _():
        acc_ref[...] = jnp.zeros_like(acc_ref)

    dr = xr_ref[...] - yr_ref[...]
    di = xi_ref[...] - yi_ref[...]
    sq = dr * dr + di * di
    # Leading-axis sum = chain of vector adds (VPU only); no XLU in hot loop.
    acc_ref[...] += jnp.sum(sq.reshape(-1, SUBLANES, LANES), axis=0,
                            keepdims=True)


def _num_tensorcores():
    # Dual-TC split only helps on v7x; single-TC chips would just pay extra
    # grid steps / padding / a second accumulator for nothing.
    try:
        kind = jax.devices()[0].device_kind.lower()
        return 2 if ("v7" in kind or "7x" in kind) else 1
    except Exception:  # pragma: no cover - conservative fallback
        return 1


@jax.jit
def complex_mse_loss(inp, tgt):
    """inp, tgt: complex arrays of identical shape. Returns float32 scalar."""
    assert inp.shape == tgt.shape, (inp.shape, tgt.shape)
    n_elems = inp.size  # number of complex elements (static)

    # One unavoidable extraction pass: complex -> four flat f32 planes.
    xr = jnp.real(inp).astype(jnp.float32).reshape(-1)
    xi = jnp.imag(inp).astype(jnp.float32).reshape(-1)
    yr = jnp.real(tgt).astype(jnp.float32).reshape(-1)
    yi = jnp.imag(tgt).astype(jnp.float32).reshape(-1)

    # Small-size bypass: prep + dispatch would dominate; fused XLA wins.
    # (n_elems == 0 falls through here and yields nan, matching torch.mean.)
    if n_elems < SMALL_BYPASS:
        sq = (xr - yr) ** 2 + (xi - yi) ** 2
        return jnp.sum(sq) / jnp.float32(n_elems)

    ncores = _num_tensorcores()
    rows = n_elems // LANES          # full lane-dense rows available (>= 8)
    if rows < ncores * SUBLANES:
        ncores = 1

    rows_per_core = rows // ncores
    tile_rows = min(TR_MAX, (rows_per_core // SUBLANES) * SUBLANES)
    steps = rows // (ncores * tile_rows)
    bulk_rows = ncores * steps * tile_rows
    bulk = bulk_rows * LANES         # f32 elements per plane fed to Pallas

    # Aligned bulk -> lane-dense (rows, 128) slabs (slice+reshape fuses with
    # the extraction above; no extra pad/concat HBM passes).
    xr_b = xr[:bulk].reshape(bulk_rows, LANES)
    xi_b = xi[:bulk].reshape(bulk_rows, LANES)
    yr_b = yr[:bulk].reshape(bulk_rows, LANES)
    yi_b = yi[:bulk].reshape(bulk_rows, LANES)

    # Ragged tail (< one tile of rows + partial row) summed in plain JAX.
    if bulk < n_elems:
        tail_sum = jnp.sum((xr[bulk:] - yr[bulk:]) ** 2
                           + (xi[bulk:] - yi[bulk:]) ** 2)
    else:
        tail_sum = jnp.float32(0.0)

    in_spec = pl.BlockSpec((tile_rows, LANES), lambda c, i: (c * steps + i, 0))
    out_spec = pl.BlockSpec((1, SUBLANES, LANES), lambda c, i: (c, 0, 0))

    partials = pl.pallas_call(
        _cmse_kernel,
        out_shape=jax.ShapeDtypeStruct((ncores, SUBLANES, LANES), jnp.float32),
        grid_spec=pltpu.PrefetchScalarGridSpec(
            num_scalar_prefetch=0,
            grid=(ncores, steps),
            in_specs=[in_spec, in_spec, in_spec, in_spec],
            out_specs=out_spec,
        ),
        compiler_params=pltpu.CompilerParams(
            dimension_semantics=("parallel", "arbitrary"),
            vmem_limit_bytes=32 * 1024 * 1024,
        ),
        cost_estimate=pl.CostEstimate(
            flops=6 * bulk,
            transcendentals=0,
            bytes_accessed=4 * bulk * 4 + ncores * SUBLANES * LANES * 4,
        ),
    )(xr_b, xi_b, yr_b, yi_b)

    # mse_real + mse_imag == (sum of squared diffs over both planes) / n_elems
    return (jnp.sum(partials) + tail_sum) / jnp.float32(n_elems)


if __name__ == "__main__":
    key = jax.random.PRNGKey(0)
    k1, k2, k3, k4 = jax.random.split(key, 4)

    # Small NCHW-like complex tensors (2048 complex elems -> Pallas path).
    shape = (2, 4, 16, 16)
    inp = (jax.random.normal(k1, shape, dtype=jnp.float32)
           + 1j * jax.random.normal(k2, shape, dtype=jnp.float32)
           ).astype(jnp.complex64)
    tgt = (jax.random.normal(k3, shape, dtype=jnp.float32)
           + 1j * jax.random.normal(k4, shape, dtype=jnp.float32)
           ).astype(jnp.complex64)

    loss = complex_mse_loss(inp, tgt)
    jax.block_until_ready(loss)

    ref = (jnp.mean((jnp.real(inp) - jnp.real(tgt)) ** 2)
           + jnp.mean((jnp.imag(inp) - jnp.imag(tgt)) ** 2))
    assert jnp.allclose(loss, ref, rtol=1e-5, atol=1e-5), (loss, ref)

    # Second shape with a ragged tail (1155 complex elems -> bulk + JAX tail).
    shape2 = (3, 5, 11, 7)
    inp2 = (jax.random.normal(k1, shape2, dtype=jnp.float32)
            + 1j * jax.random.normal(k2, shape2, dtype=jnp.float32)
            ).astype(jnp.complex64)
    tgt2 = (jax.random.normal(k3, shape2, dtype=jnp.float32)
            + 1j * jax.random.normal(k4, shape2, dtype=jnp.float32)
            ).astype(jnp.complex64)
    loss2 = complex_mse_loss(inp2, tgt2)
    jax.block_until_ready(loss2)
    ref2 = (jnp.mean((jnp.real(inp2) - jnp.real(tgt2)) ** 2)
            + jnp.mean((jnp.imag(inp2) - jnp.imag(tgt2)) ** 2))
    assert jnp.allclose(loss2, ref2, rtol=1e-5, atol=1e-5), (loss2, ref2)

    print("KERNEL_OK")
</pallas_src>

<mosaic_0001>
module attributes {stable_mosaic.version = 11 : i64} {
  func.func @_cmse_kernel(%arg0: i32, %arg1: i32, %arg2: memref<16x128xf32, #tpu.memory_space<vmem>>, %arg3: memref<16x128xf32, #tpu.memory_space<vmem>>, %arg4: memref<16x128xf32, #tpu.memory_space<vmem>>, %arg5: memref<16x128xf32, #tpu.memory_space<vmem>>, %arg6: memref<1x8x128xf32, #tpu.memory_space<vmem>>) attributes {dimension_semantics = [#tpu.dimension_semantics<parallel>, #tpu.dimension_semantics<arbitrary>], iteration_bounds = array<i64: 1, 1>, scalar_prefetch = 0 : i64, scratch_operands = 0 : i64, tpu.core_type = #tpu.core_type<tc>, window_params = [{transform_indices = @transform_0, window_bounds = array<i64: 16, 128>}, {transform_indices = @transform_1, window_bounds = array<i64: 16, 128>}, {transform_indices = @transform_2, window_bounds = array<i64: 16, 128>}, {transform_indices = @transform_3, window_bounds = array<i64: 16, 128>}, {transform_indices = @transform_4, window_bounds = array<i64: 1, 8, 128>}]} {
    %c0_i32 = arith.constant 0 : i32
    %0 = arith.cmpi eq, %arg1, %c0_i32 : i32
    %1 = arith.extui %0 : i1 to i32
    %c0_i32_0 = arith.constant 0 : i32
    %2 = arith.cmpi ne, %1, %c0_i32_0 : i32
    scf.if %2 {
      %cst_14 = arith.constant 0.000000e+00 : f32
      %18 = vector.broadcast %cst_14 : f32 to vector<1x8x128xf32>
      %c0_15 = arith.constant 0 : index
      %c0_16 = arith.constant 0 : index
      %c0_17 = arith.constant 0 : index
      %19 = vector.load %arg6[%c0_15, %c0_16, %c0_17] : memref<1x8x128xf32, #tpu.memory_space<vmem>>, vector<1x8x128xf32>
      tpu.vector_store %arg6[%c0_15, %c0_16, %c0_17], %18 {strides = array<i32>} : memref<1x8x128xf32, #tpu.memory_space<vmem>>, vector<1x8x128xf32>,
    } else {
    }
    %c0 = arith.constant 0 : index
    %c0_1 = arith.constant 0 : index
    %3 = vector.load %arg2[%c0, %c0_1] : memref<16x128xf32, #tpu.memory_space<vmem>>, vector<16x128xf32>
    %c0_2 = arith.constant 0 : index
    %c0_3 = arith.constant 0 : index
    %4 = vector.load %arg4[%c0_2, %c0_3] : memref<16x128xf32, #tpu.memory_space<vmem>>, vector<16x128xf32>
    %5 = arith.subf %3, %4 : vector<16x128xf32>
    %c0_4 = arith.constant 0 : index
    %c0_5 = arith.constant 0 : index
    %6 = vector.load %arg3[%c0_4, %c0_5] : memref<16x128xf32, #tpu.memory_space<vmem>>, vector<16x128xf32>
    %c0_6 = arith.constant 0 : index
    %c0_7 = arith.constant 0 : index
    %7 = vector.load %arg5[%c0_6, %c0_7] : memref<16x128xf32, #tpu.memory_space<vmem>>, vector<16x128xf32>
    %8 = arith.subf %6, %7 : vector<16x128xf32>
    %9 = arith.mulf %5, %5 : vector<16x128xf32>
    %10 = arith.mulf %8, %8 : vector<16x128xf32>
    %11 = arith.addf %9, %10 : vector<16x128xf32>
    %c0_8 = arith.constant 0 : index
    %c0_9 = arith.constant 0 : index
    %c0_10 = arith.constant 0 : index
    %12 = vector.load %arg6[%c0_8, %c0_9, %c0_10] : memref<1x8x128xf32, #tpu.memory_space<vmem>>, vector<1x8x128xf32>
    %13 = vector.shape_cast %11 : vector<16x128xf32> to vector<2x8x128xf32>
    %cst = arith.constant dense<0.000000e+00> : vector<8x128xf32>
    %14 = vector.multi_reduction <add>, %13, %cst [0] : vector<2x8x128xf32> to vector<8x128xf32>
    %15 = vector.shape_cast %14 : vector<8x128xf32> to vector<1x8x128xf32>
    %16 = arith.addf %12, %15 : vector<1x8x128xf32>
    %c0_11 = arith.constant 0 : index
    %c0_12 = arith.constant 0 : index
    %c0_13 = arith.constant 0 : index
    %17 = vector.load %arg6[%c0_11, %c0_12, %c0_13] : memref<1x8x128xf32, #tpu.memory_space<vmem>>, vector<1x8x128xf32>
    tpu.vector_store %arg6[%c0_11, %c0_12, %c0_13], %16 {strides = array<i32>} : memref<1x8x128xf32, #tpu.memory_space<vmem>>, vector<1x8x128xf32>,
    return
  }
  func.func @transform_0(%arg0: i32, %arg1: i32) -> (i32, i32) {
    %c1_i32 = arith.constant 1 : i32
    %0 = arith.muli %arg0, %c1_i32 : i32
    %1 = arith.addi %0, %arg1 : i32
    %c0_i32 = arith.constant 0 : i32
    %c0_i32_0 = arith.constant 0 : i32
    return %1, %c0_i32 : i32, i32
  }
  func.func @transform_1(%arg0: i32, %arg1: i32) -> (i32, i32) {
    %c1_i32 = arith.constant 1 : i32
    %0 = arith.muli %arg0, %c1_i32 : i32
    %1 = arith.addi %0, %arg1 : i32
    %c0_i32 = arith.constant 0 : i32
    %c0_i32_0 = arith.constant 0 : i32
    return %1, %c0_i32 : i32, i32
  }
  func.func @transform_2(%arg0: i32, %arg1: i32) -> (i32, i32) {
    %c1_i32 = arith.constant 1 : i32
    %0 = arith.muli %arg0, %c1_i32 : i32
    %1 = arith.addi %0, %arg1 : i32
    %c0_i32 = arith.constant 0 : i32
    %c0_i32_0 = arith.constant 0 : i32
    return %1, %c0_i32 : i32, i32
  }
  func.func @transform_3(%arg0: i32, %arg1: i32) -> (i32, i32) {
    %c1_i32 = arith.constant 1 : i32
    %0 = arith.muli %arg0, %c1_i32 : i32
    %1 = arith.addi %0, %arg1 : i32
    %c0_i32 = arith.constant 0 : i32
    %c0_i32_0 = arith.constant 0 : i32
    return %1, %c0_i32 : i32, i32
  }
  func.func @transform_4(%arg0: i32, %arg1: i32) -> (i32, i32, i32) {
    %c0_i32 = arith.constant 0 : i32
    %c0_i32_0 = arith.constant 0 : i32
    %c0_i32_1 = arith.constant 0 : i32
    return %arg0, %c0_i32, %c0_i32_0 : i32, i32, i32
  }
}

</mosaic_0001>

<llo_original>
// kernel: custom-call.1
$region0: #{custom-call.1}
  %s0 = inlined_call_operand.hbm [shape: c64[2,4,16,16], index: 0, kind: input, shape index: {}]
  %s1 = inlined_call_operand.vmem [shape: f32[2,4,16,16], index: 1, kind: output, shape index: {}]
  %s2 = scalar_lea.hbm %s0, 2048
  $region1: #{custom-call.1} parent=0
    #allocation0 [shape = 's32[1]{0}', space=sflag, size = 0x4, scoped, tag = 'scoped memory for custom-call.1']
    %3 = vsyncpa [#allocation0], 0
    %s4 = sshll.u32 %s1, 4
    %s5 = int_to_ptr.vmem [resolvable:$true] %s4
    %7 = dma.hbm_to_vmem [thread:$0]  %s2, 2048, %s5, [#allocation0]
    %8 = dma.done [#allocation0], 2048
    %9 = vsyncpa [#allocation0], 1

// kernel: custom-call
$region0: #{custom-call}
  %s0 = inlined_call_operand.hbm [shape: c64[2,4,16,16], index: 0, kind: input, shape index: {}]
  %s1 = inlined_call_operand.vmem [shape: f32[2,4,16,16], index: 1, kind: output, shape index: {}]
  $region1: #{custom-call} parent=0
    #allocation0 [shape = 's32[1]{0}', space=sflag, size = 0x4, scoped, tag = 'scoped memory for custom-call']
    %2 = vsyncpa [#allocation0], 0
    %s3 = sshll.u32 %s1, 4
    %s4 = int_to_ptr.vmem [resolvable:$true] %s3
    %6 = dma.hbm_to_vmem [thread:$0]  %s0, 2048, %s4, [#allocation0]
    %7 = dma.done [#allocation0], 2048
    %8 = vsyncpa [#allocation0], 1

// kernel: complex_mse_loss.1
$region0: #{complex_mse_loss.1}
  #allocation0 [shape = 'u32[]', space=smem, size = 0x4, offset = 0x4, fixed_abs, tag = 'smem constant byte address 0x4 - core index']
  #allocation1 [shape = 'u32[144,128]{1,0:T(1,128)}', space=vmem, size = 0x12000, scoped, tag = 'internal scratch']
  %s0 = inlined_call_operand.vmem [shape: f32[16,128], index: 0, kind: input, shape index: {}]
  %s1 = inlined_call_operand.vmem [shape: f32[16,128], index: 1, kind: input, shape index: {}]
  %s2 = inlined_call_operand.vmem [shape: f32[16,128], index: 2, kind: input, shape index: {}]
  %s3 = inlined_call_operand.vmem [shape: f32[16,128], index: 3, kind: input, shape index: {}]
  %s4 = inlined_call_operand.vmem [shape: f32[1,8,128], index: 4, kind: output, shape index: {}]
  %s5 = sld [smem:[#allocation0]]
  $region30: #{complex_mse_loss.1} parent=0
    _
  %s7 = ssub.s32 1, %s5
  %s8 = scalar_select 0, %s7, %s5
  // Predicated region
  $region2: #{complex_mse_loss.1} parent=0 // pred_check
    _
  $region3: #{complex_mse_loss.1} parent=0 // pred_check_branch
    %10 = sbr.rel (0) target = $region5
  $region4: #{complex_mse_loss.1} parent=0 // pred_region
    %s11 = sadd.s32 0, 0
    %s12 = smul.u32 2, %s11
    %p13 = scmp.lt.s32.totalorder %s12, 1
    %s14 = scalar_select %p13, %s12, 1
    %s15 = smul.addr %s14, 8
    %s16 = scalar_lea.vmem %s0, %s15
    %s17 = sadd.s32 0, 0
    %s18 = smul.u32 2, %s17
  $region5: #{complex_mse_loss.1} parent=0 // pred_fallthru
    _
  // Predicated region
  $region6: #{complex_mse_loss.1} parent=0 // pred_check
    _
  $region7: #{complex_mse_loss.1} parent=0 // pred_check_branch
    %20 = sbr.rel (0) target = $region9
  $region8: #{complex_mse_loss.1} parent=0 // pred_region
    %s21 = sadd.s32 0, 0
    %s22 = smul.u32 2, %s21
    %p23 = scmp.lt.s32.totalorder %s22, 1
    %s24 = scalar_select %p23, %s22, 1
    %s25 = smul.addr %s24, 8
    %s26 = scalar_lea.vmem %s1, %s25
    %s27 = sadd.s32 0, 0
    %s28 = smul.u32 2, %s27
  $region9: #{complex_mse_loss.1} parent=0 // pred_fallthru
    _
  // Predicated region
  $region10: #{complex_mse_loss.1} parent=0 // pred_check
    _
  $region11: #{complex_mse_loss.1} parent=0 // pred_check_branch
    %30 = sbr.rel (0) target = $region13
  $region12: #{complex_mse_loss.1} parent=0 // pred_region
    %s31 = sadd.s32 0, 0
    %s32 = smul.u32 2, %s31
    %p33 = scmp.lt.s32.totalorder %s32, 1
    %s34 = scalar_select %p33, %s32, 1
    %s35 = smul.addr %s34, 8
    %s36 = scalar_lea.vmem %s2, %s35
    %s37 = sadd.s32 0, 0
    %s38 = smul.u32 2, %s37
  $region13: #{complex_mse_loss.1} parent=0 // pred_fallthru
    _
  // Predicated region
  $region14: #{complex_mse_loss.1} parent=0 // pred_check
    _
  $region15: #{complex_mse_loss.1} parent=0 // pred_check_branch
    %40 = sbr.rel (0) target = $region17
  $region16: #{complex_mse_loss.1} parent=0 // pred_region
    %s41 = sadd.s32 0, 0
    %s42 = smul.u32 2, %s41
    %p43 = scmp.lt.s32.totalorder %s42, 1
    %s44 = scalar_select %p43, %s42, 1
    %s45 = smul.addr %s44, 8
    %s46 = scalar_lea.vmem %s3, %s45
    %s47 = sadd.s32 0, 0
    %s48 = smul.u32 2, %s47
  $region17: #{complex_mse_loss.1} parent=0 // pred_fallthru
    _
  %s49 = sadd.s32 0, 0
  %s50 = smul.u32 2, %s49
  %p51 = scmp.lt.s32.totalorder %s50, 1
  %s52 = scalar_select %p51, %s50, 1
  %s53 = smul.addr %s52, 8
  %s54 = scalar_lea.vmem %s0, %s53
  %s55 = sadd.s32 0, 0
  %s56 = smul.u32 2, %s55
  %p57 = scmp.lt.s32.totalorder %s56, 1
  %s58 = scalar_select %p57, %s56, 1
  %s59 = smul.addr %s58, 8
  %s60 = scalar_lea.vmem %s1, %s59
  %s61 = sadd.s32 0, 0
  %s62 = smul.u32 2, %s61
  %p63 = scmp.lt.s32.totalorder %s62, 1
  %s64 = scalar_select %p63, %s62, 1
  %s65 = smul.addr %s64, 8
  %s66 = scalar_lea.vmem %s2, %s65
  %s67 = sadd.s32 0, 0
  %s68 = smul.u32 2, %s67
  %p69 = scmp.lt.s32.totalorder %s68, 1
  %s70 = scalar_select %p69, %s68, 1
  %s71 = smul.addr %s70, 8
  %s72 = scalar_lea.vmem %s3, %s71
  %s73 = sadd.s32 0, 0
  %s74 = smul.u32 2, %s73
  %p75 = scmp.lt.s32.totalorder %s74, 1
  %s76 = scalar_select %p75, %s74, 1
  %s77 = smul.addr %s76, 8
  %s78 = scalar_lea.vmem %s0, %s77
  %s79 = sadd.s32 0, 0
  %s80 = smul.u32 2, %s79
  %s81 = sadd.s32 0, 0
  %s82 = smul.u32 2, %s81
  %p83 = scmp.lt.s32.totalorder %s82, 1
  %s84 = scalar_select %p83, %s82, 1
  %s85 = smul.addr %s84, 8
  %s86 = scalar_lea.vmem %s1, %s85
  %s87 = sadd.s32 0, 0
  %s88 = smul.u32 2, %s87
  %s89 = sadd.s32 0, 0
  %s90 = smul.u32 2, %s89
  %p91 = scmp.lt.s32.totalorder %s90, 1
  %s92 = scalar_select %p91, %s90, 1
  %s93 = smul.addr %s92, 8
  %s94 = scalar_lea.vmem %s2, %s93
  %s95 = sadd.s32 0, 0
  %s96 = smul.u32 2, %s95
  %s97 = sadd.s32 0, 0
  %s98 = smul.u32 2, %s97
  %p99 = scmp.lt.s32.totalorder %s98, 1
  %s100 = scalar_select %p99, %s98, 1
  %s101 = smul.addr %s100, 8
  %s102 = scalar_lea.vmem %s3, %s101
  %s103 = sadd.s32 0, 0
  %s104 = smul.u32 2, %s103
  %p105 = scmp.eq.s32.totalorder 0, 0
  // Predicated region
  $region18: #{complex_mse_loss.1} parent=0 // pred_check
    %p106 = pneg %p105
  $region19: #{complex_mse_loss.1} parent=0 // pred_check_branch
    %108 = sbr.rel (%p106) target = $region21
  $region20: #{complex_mse_loss.1} parent=0 // pred_region
    %109 = vst [vmem:[%s4] sm:$0xff] 0.0
  $region21: #{complex_mse_loss.1} parent=0 // pred_fallthru
    _
  %v110 = vld [vmem:[%s78] sm:$0xff]
  %v111 = vld [vmem:[%s78 + $0x8] sm:$0xff]
  %v112 = vld [vmem:[%s94] sm:$0xff]
  %v113 = vld [vmem:[%s94 + $0x8] sm:$0xff]
  %v114 = vsub.f32 %v110, %v112
  %v115 = vsub.f32 %v111, %v113
  %v116 = vld [vmem:[%s86] sm:$0xff]
  %v117 = vld [vmem:[%s86 + $0x8] sm:$0xff]
  %v118 = vld [vmem:[%s102] sm:$0xff]
  %v119 = vld [vmem:[%s102 + $0x8] sm:$0xff]
  %v120 = vsub.f32 %v116, %v118
  %v121 = vsub.f32 %v117, %v119
  %v122 = vmul.f32 %v114, %v114
  %v123 = vmul.f32 %v115, %v115
  %v124 = vmul.f32 %v120, %v120
  %v125 = vmul.f32 %v121, %v121
  %v126 = vadd.f32 %v122, %v124
  %v127 = vadd.f32 %v123, %v125
  %v128 = vld [vmem:[%s4] sm:$0xff]
  %v129 = vadd.f32 %v126, %v127
  %v130 = vadd.f32 %v128, %v129
  %131 = vst [vmem:[%s4] sm:$0xff] %v130
  // Predicated region
  $region22: #{complex_mse_loss.1} parent=0 // pred_check
    _
  $region23: #{complex_mse_loss.1} parent=0 // pred_check_branch
    %133 = sbr.rel (0) target = $region25
  $region24: #{complex_mse_loss.1} parent=0 // pred_region
    _
  $region25: #{complex_mse_loss.1} parent=0 // pred_fallthru
    _
  // Predicated region
  $region26: #{complex_mse_loss.1} parent=0 // pred_check
    _
  $region27: #{complex_mse_loss.1} parent=0 // pred_check_branch
    %135 = sbr.rel (0) target = $region29
  $region28: #{complex_mse_loss.1} parent=0 // pred_region
    _
  $region29: #{complex_mse_loss.1} parent=0 // pred_fallthru
    _

</llo_original>
